<compile_context>
chip_gen: v6e
topology: v6e:2x2x1
jax: 0.10.0
libtpu: 0.0.40
codegen_flags: <defaults>
</compile_context>

<pallas_src>
import jax
import jax.numpy as jnp
from jax.experimental import pallas as pl
from jax.experimental.pallas import tpu as pltpu


def _round_up(x, m):
    return (x + m - 1) // m * m


def npnet_kernel(emb_ref, aug_ref,
                 w1_ref, b1_ref, w2_ref, b2_ref, w3_ref, b3_ref,
                 out_ref):
    """One batch tile.

    emb_ref : (TM, H)  bf16 embedding tile
    aug_ref : (1, H)   bf16 gaussian augmentation vector
    out_ref : (TM, 6)  f32  [:,0:2]=feature, [:,2:4]=aug_feature, [:,4:6]=softmax(feature)
    """
    # ---- Layer 1 (768x128, ~92% of FLOPs): run ONCE, reuse via linearity ----
    #   (emb + aug) @ W1 + b1 == (emb @ W1 + b1) + (aug @ W1)
    pre1 = jnp.dot(emb_ref[...], w1_ref[...],
                   preferred_element_type=jnp.float32) + b1_ref[...]       # [TM,128] f32
    aug1 = jnp.dot(aug_ref[...], w1_ref[...],
                   preferred_element_type=jnp.float32)                     # [1,128]  f32
    h1 = jnp.maximum(pre1, 0.0)
    h1_aug = jnp.maximum(pre1 + aug1, 0.0)

    # ---- Layers 2-3 are tiny; stack so each RHS is pushed to the MXU once ---
    hs = jnp.concatenate([h1, h1_aug], axis=0)                             # [2*TM,128]
    h2 = jnp.maximum(
        jnp.dot(hs, w2_ref[...], preferred_element_type=jnp.float32) + b2_ref[...],
        0.0)                                                               # [2*TM,64]
    y = jnp.dot(h2, w3_ref[...], preferred_element_type=jnp.float32) + b3_ref[...]  # [2*TM,2]

    tm = emb_ref.shape[0]                                                  # static
    feat = y[:tm, :]                                                       # encoder(embedding)
    aug_feat = y[tm:, :]                                                   # encoder(embedding+aug)

    # ---- 2-class softmax == sigmoid of the logit difference (exact) --------
    d = feat[:, 1:2] - feat[:, 0:1]
    p1 = 1.0 / (1.0 + jnp.exp(-d))
    p0 = 1.0 - p1

    # ---- Direct slice stores; no in-kernel lane concat/shuffle -------------
    out_ref[:, 0:2] = feat
    out_ref[:, 2:4] = aug_feat
    out_ref[:, 4:5] = p0
    out_ref[:, 5:6] = p1


def npnet_forward(embedding, aug_dis, params, *, tile_m=None):
    """embedding: [B, H] f32, aug_dis: [H] f32, params: (w1,b1,w2,b2,w3,b3).

    Returns (feature [B,2], aug_feature [B,2], softmax(feature) [B,2]).
    """
    B, H = embedding.shape
    w1, b1, w2, b2, w3, b3 = params

    if tile_m is None:
        if B <= 256:
            # Small batch: one tile (nothing to shard; padding is negligible).
            tile_m = _round_up(B, 16)
        else:
            # Big tiles amortize per-step overhead; cap at ~B/2 so grid_m >= 2
            # and the "parallel" axis can use v7x's second TensorCore.
            tile_m = min(1024, _round_up(pl.cdiv(B, 2), 16))
    grid_m = pl.cdiv(B, tile_m)
    Bp = grid_m * tile_m

    # bf16 for the dominant HBM stream (embedding) and the MXU operands of the
    # big matmul; accumulation and all elementwise math stay f32.
    emb = embedding.astype(jnp.bfloat16)
    if Bp != B:
        # For large B choose tile_m dividing B (or pass it explicitly) to avoid
        # this whole-array pad copy; here it only pads a small tail.
        emb = jnp.pad(emb, ((0, Bp - B), (0, 0)))

    rep = lambda i: (0, 0)  # weights / aug stay resident across grid steps
    grid_spec = pltpu.PrefetchScalarGridSpec(
        num_scalar_prefetch=0,
        grid=(grid_m,),
        in_specs=[
            pl.BlockSpec((tile_m, H), lambda i: (i, 0)),   # embedding tile (bf16)
            pl.BlockSpec((1, H), rep),                     # aug_dis       (bf16)
            pl.BlockSpec((H, 128), rep),                   # w1            (bf16)
            pl.BlockSpec((1, 128), rep),                   # b1  (f32)
            pl.BlockSpec((128, 64), rep),                  # w2  (f32)
            pl.BlockSpec((1, 64), rep),                    # b2  (f32)
            pl.BlockSpec((64, 2), rep),                    # w3  (f32)
            pl.BlockSpec((1, 2), rep),                     # b3  (f32)
        ],
        out_specs=pl.BlockSpec((tile_m, 6), lambda i: (i, 0)),
    )

    out = pl.pallas_call(
        npnet_kernel,
        out_shape=jax.ShapeDtypeStruct((Bp, 6), jnp.float32),
        grid_spec=grid_spec,
        compiler_params=pltpu.CompilerParams(
            dimension_semantics=("parallel",)),            # batch tiles -> both TCs on v7x
    )(
        emb,
        aug_dis.reshape(1, H).astype(jnp.bfloat16),
        w1.astype(jnp.bfloat16), b1.reshape(1, -1),
        w2, b2.reshape(1, -1),
        w3, b3.reshape(1, -1),
    )

    feat = out[:B, 0:2]
    aug_feat = out[:B, 2:4]
    prob = out[:B, 4:6]
    return feat, aug_feat, prob


def init_params(key, hidden_size):
    """Deterministic synthetic encoder weights (shapes from NPnet.__init__)."""
    ks = jax.random.split(key, 6)
    def lin(kw, kb, fan_in, fan_out):
        bound = 1.0 / jnp.sqrt(fan_in)
        w = jax.random.uniform(kw, (fan_in, fan_out), jnp.float32, -bound, bound)
        b = jax.random.uniform(kb, (fan_out,), jnp.float32, -bound, bound)
        return w, b
    w1, b1 = lin(ks[0], ks[1], hidden_size, 128)
    w2, b2 = lin(ks[2], ks[3], 128, 64)
    w3, b3 = lin(ks[4], ks[5], 64, 2)
    return (w1, b1, w2, b2, w3, b3)


def reference(embedding, aug_dis, params):
    w1, b1, w2, b2, w3, b3 = params
    def enc(x):
        h = jnp.maximum(x @ w1 + b1, 0.0)
        h = jnp.maximum(h @ w2 + b2, 0.0)
        return h @ w3 + b3
    feat = enc(embedding)
    aug_feat = enc(embedding + aug_dis[None, :])
    prob = jax.nn.softmax(feat, axis=1)
    return feat, aug_feat, prob


if __name__ == "__main__":
    # TODO(synk): RoBERTa tokenizer + transformer backbone are external pretrained
    # components; the kernel consumes the CLS embedding directly.
    B = 2            # batch of texts (batch larger in production to amortize weight DMA)
    H = 768          # roberta-base hidden_size

    key = jax.random.PRNGKey(0)
    k_emb, k_aug, k_par = jax.random.split(key, 3)

    embedding = jax.random.normal(k_emb, (B, H), jnp.float32)

    # is_aug == 'gaussian': aug_dis ~ N(mean=state[0], std=state[1]), shape (H,)
    state = (0.0, 0.1)
    aug_dis = state[0] + state[1] * jax.random.normal(k_aug, (H,), jnp.float32)

    params = init_params(k_par, H)

    feat, aug_feat, prob = npnet_forward(embedding, aug_dis, params)
    jax.block_until_ready((feat, aug_feat, prob))

    ref_feat, ref_aug_feat, ref_prob = reference(embedding, aug_dis, params)
    # Tolerances account for bf16 inputs to the 768x128 matmul (f32 accumulation).
    assert jnp.allclose(feat, ref_feat, atol=2e-2, rtol=2e-2)
    assert jnp.allclose(aug_feat, ref_aug_feat, atol=2e-2, rtol=2e-2)
    assert jnp.allclose(prob, ref_prob, atol=1e-2, rtol=1e-2)

    print("KERNEL_OK")
</pallas_src>

<mosaic_0001>
module attributes {stable_mosaic.version = 11 : i64} {
  func.func @npnet_kernel(%arg0: i32, %arg1: memref<16x768xbf16, #tpu.memory_space<vmem>>, %arg2: memref<1x768xbf16, #tpu.memory_space<vmem>>, %arg3: memref<768x128xbf16, #tpu.memory_space<vmem>>, %arg4: memref<1x128xf32, #tpu.memory_space<vmem>>, %arg5: memref<128x64xf32, #tpu.memory_space<vmem>>, %arg6: memref<1x64xf32, #tpu.memory_space<vmem>>, %arg7: memref<64x2xf32, #tpu.memory_space<vmem>>, %arg8: memref<1x2xf32, #tpu.memory_space<vmem>>, %arg9: memref<16x6xf32, #tpu.memory_space<vmem>>) attributes {dimension_semantics = [#tpu.dimension_semantics<parallel>], iteration_bounds = array<i64: 1>, scalar_prefetch = 0 : i64, scratch_operands = 0 : i64, tpu.core_type = #tpu.core_type<tc>, window_params = [{transform_indices = @transform_0, window_bounds = array<i64: 16, 768>}, {pipeline_mode = #tpu.pipeline_mode<synchronous>, transform_indices = @transform_1, window_bounds = array<i64: 1, 768>}, {pipeline_mode = #tpu.pipeline_mode<synchronous>, transform_indices = @transform_2, window_bounds = array<i64: 768, 128>}, {pipeline_mode = #tpu.pipeline_mode<synchronous>, transform_indices = @transform_3, window_bounds = array<i64: 1, 128>}, {pipeline_mode = #tpu.pipeline_mode<synchronous>, transform_indices = @transform_4, window_bounds = array<i64: 128, 64>}, {pipeline_mode = #tpu.pipeline_mode<synchronous>, transform_indices = @transform_5, window_bounds = array<i64: 1, 64>}, {pipeline_mode = #tpu.pipeline_mode<synchronous>, transform_indices = @transform_6, window_bounds = array<i64: 64, 2>}, {pipeline_mode = #tpu.pipeline_mode<synchronous>, transform_indices = @transform_7, window_bounds = array<i64: 1, 2>}, {transform_indices = @transform_8, window_bounds = array<i64: 16, 6>}]} {
    %c0 = arith.constant 0 : index
    %c0_0 = arith.constant 0 : index
    %0 = vector.load %arg1[%c0, %c0_0] : memref<16x768xbf16, #tpu.memory_space<vmem>>, vector<16x768xbf16>
    %c0_1 = arith.constant 0 : index
    %c0_2 = arith.constant 0 : index
    %1 = vector.load %arg3[%c0_1, %c0_2] : memref<768x128xbf16, #tpu.memory_space<vmem>>, vector<768x128xbf16>
    %cst = arith.constant dense<0.000000e+00> : vector<16x128xf32>
    %2 = tpu.matmul %0, %1, %cst {dimension_numbers = #tpu.dot_dimension_numbers<[1], [0], [0], [1], [0, 0, 1, 1], [], []>} : vector<16x768xbf16>, vector<768x128xbf16>, vector<16x128xf32> -> vector<16x128xf32>
    %c0_3 = arith.constant 0 : index
    %c0_4 = arith.constant 0 : index
    %3 = vector.load %arg4[%c0_3, %c0_4] : memref<1x128xf32, #tpu.memory_space<vmem>>, vector<1x128xf32>
    %4 = vector.broadcast %3 : vector<1x128xf32> to vector<16x128xf32>
    %5 = arith.addf %2, %4 : vector<16x128xf32>
    %c0_5 = arith.constant 0 : index
    %c0_6 = arith.constant 0 : index
    %6 = vector.load %arg2[%c0_5, %c0_6] : memref<1x768xbf16, #tpu.memory_space<vmem>>, vector<1x768xbf16>
    %c0_7 = arith.constant 0 : index
    %c0_8 = arith.constant 0 : index
    %7 = vector.load %arg3[%c0_7, %c0_8] : memref<768x128xbf16, #tpu.memory_space<vmem>>, vector<768x128xbf16>
    %cst_9 = arith.constant dense<0.000000e+00> : vector<1x128xf32>
    %8 = tpu.matmul %6, %7, %cst_9 {dimension_numbers = #tpu.dot_dimension_numbers<[1], [0], [0], [1], [0, 0, 1, 1], [], []>} : vector<1x768xbf16>, vector<768x128xbf16>, vector<1x128xf32> -> vector<1x128xf32>
    %cst_10 = arith.constant 0.000000e+00 : f32
    %9 = vector.broadcast %cst_10 : f32 to vector<16x128xf32>
    %10 = arith.maximumf %5, %9 : vector<16x128xf32>
    %11 = vector.broadcast %8 : vector<1x128xf32> to vector<16x128xf32>
    %12 = arith.addf %5, %11 : vector<16x128xf32>
    %cst_11 = arith.constant 0.000000e+00 : f32
    %13 = vector.broadcast %cst_11 : f32 to vector<16x128xf32>
    %14 = arith.maximumf %12, %13 : vector<16x128xf32>
    %15 = tpu.concatenate %10, %14 in 0 : vector<16x128xf32>, vector<16x128xf32> -> vector<32x128xf32>
    %c0_12 = arith.constant 0 : index
    %c0_13 = arith.constant 0 : index
    %16 = vector.load %arg5[%c0_12, %c0_13] : memref<128x64xf32, #tpu.memory_space<vmem>>, vector<128x64xf32>
    %cst_14 = arith.constant dense<0.000000e+00> : vector<32x64xf32>
    %17 = tpu.matmul %15, %16, %cst_14 {dimension_numbers = #tpu.dot_dimension_numbers<[1], [0], [0], [1], [0, 0, 1, 1], [], []>} : vector<32x128xf32>, vector<128x64xf32>, vector<32x64xf32> -> vector<32x64xf32>
    %c0_15 = arith.constant 0 : index
    %c0_16 = arith.constant 0 : index
    %18 = vector.load %arg6[%c0_15, %c0_16] : memref<1x64xf32, #tpu.memory_space<vmem>>, vector<1x64xf32>
    %19 = vector.broadcast %18 : vector<1x64xf32> to vector<32x64xf32>
    %20 = arith.addf %17, %19 : vector<32x64xf32>
    %cst_17 = arith.constant 0.000000e+00 : f32
    %21 = vector.broadcast %cst_17 : f32 to vector<32x64xf32>
    %22 = arith.maximumf %20, %21 : vector<32x64xf32>
    %c0_18 = arith.constant 0 : index
    %c0_19 = arith.constant 0 : index
    %23 = vector.load %arg7[%c0_18, %c0_19] : memref<64x2xf32, #tpu.memory_space<vmem>>, vector<64x2xf32>
    %cst_20 = arith.constant dense<0.000000e+00> : vector<32x2xf32>
    %24 = tpu.matmul %22, %23, %cst_20 {dimension_numbers = #tpu.dot_dimension_numbers<[1], [0], [0], [1], [0, 0, 1, 1], [], []>} : vector<32x64xf32>, vector<64x2xf32>, vector<32x2xf32> -> vector<32x2xf32>
    %c0_21 = arith.constant 0 : index
    %c0_22 = arith.constant 0 : index
    %25 = vector.load %arg8[%c0_21, %c0_22] : memref<1x2xf32, #tpu.memory_space<vmem>>, vector<1x2xf32>
    %26 = vector.broadcast %25 : vector<1x2xf32> to vector<32x2xf32>
    %27 = arith.addf %24, %26 : vector<32x2xf32>
    %28 = vector.extract_strided_slice %27 {offsets = [0, 0], sizes = [16, 2], strides = [1, 1]} : vector<32x2xf32> to vector<16x2xf32>
    %29 = vector.extract_strided_slice %27 {offsets = [16, 0], sizes = [16, 2], strides = [1, 1]} : vector<32x2xf32> to vector<16x2xf32>
    %30 = vector.extract_strided_slice %28 {offsets = [0, 1], sizes = [16, 1], strides = [1, 1]} : vector<16x2xf32> to vector<16x1xf32>
    %31 = vector.extract_strided_slice %28 {offsets = [0, 0], sizes = [16, 1], strides = [1, 1]} : vector<16x2xf32> to vector<16x1xf32>
    %32 = arith.subf %30, %31 : vector<16x1xf32>
    %cst_23 = arith.constant 0.000000e+00 : f32
    %33 = vector.broadcast %cst_23 : f32 to vector<16x1xf32>
    %34 = arith.subf %33, %32 : vector<16x1xf32>
    %35 = math.exp %34 : vector<16x1xf32>
    %cst_24 = arith.constant 1.000000e+00 : f32
    %36 = vector.broadcast %cst_24 : f32 to vector<16x1xf32>
    %37 = arith.addf %36, %35 : vector<16x1xf32>
    %cst_25 = arith.constant 1.000000e+00 : f32
    %38 = vector.broadcast %cst_25 : f32 to vector<16x1xf32>
    %39 = arith.divf %38, %37 : vector<16x1xf32>
    %cst_26 = arith.constant 1.000000e+00 : f32
    %40 = vector.broadcast %cst_26 : f32 to vector<16x1xf32>
    %41 = arith.subf %40, %39 : vector<16x1xf32>
    %c0_27 = arith.constant 0 : index
    %c0_28 = arith.constant 0 : index
    %42 = vector.load %arg9[%c0_27, %c0_28] : memref<16x6xf32, #tpu.memory_space<vmem>>, vector<16x2xf32>
    tpu.vector_store %arg9[%c0_27, %c0_28], %28 {strides = array<i32>} : memref<16x6xf32, #tpu.memory_space<vmem>>, vector<16x2xf32>,
    %c0_29 = arith.constant 0 : index
    %c2 = arith.constant 2 : index
    %43 = vector.load %arg9[%c0_29, %c2] : memref<16x6xf32, #tpu.memory_space<vmem>>, vector<16x2xf32>
    tpu.vector_store %arg9[%c0_29, %c2], %29 {strides = array<i32>} : memref<16x6xf32, #tpu.memory_space<vmem>>, vector<16x2xf32>,
    %c0_30 = arith.constant 0 : index
    %c4 = arith.constant 4 : index
    %44 = vector.load %arg9[%c0_30, %c4] : memref<16x6xf32, #tpu.memory_space<vmem>>, vector<16x1xf32>
    tpu.vector_store %arg9[%c0_30, %c4], %41 {strides = array<i32>} : memref<16x6xf32, #tpu.memory_space<vmem>>, vector<16x1xf32>,
    %c0_31 = arith.constant 0 : index
    %c5 = arith.constant 5 : index
    %45 = vector.load %arg9[%c0_31, %c5] : memref<16x6xf32, #tpu.memory_space<vmem>>, vector<16x1xf32>
    tpu.vector_store %arg9[%c0_31, %c5], %39 {strides = array<i32>} : memref<16x6xf32, #tpu.memory_space<vmem>>, vector<16x1xf32>,
    return
  }
  func.func @transform_0(%arg0: i32) -> (i32, i32) {
    %c0_i32 = arith.constant 0 : i32
    %c0_i32_0 = arith.constant 0 : i32
    return %arg0, %c0_i32 : i32, i32
  }
  func.func @transform_1(%arg0: i32) -> (i32, i32) {
    %c0_i32 = arith.constant 0 : i32
    %c0_i32_0 = arith.constant 0 : i32
    %c0_i32_1 = arith.constant 0 : i32
    return %c0_i32, %c0_i32_0 : i32, i32
  }
  func.func @transform_2(%arg0: i32) -> (i32, i32) {
    %c0_i32 = arith.constant 0 : i32
    %c0_i32_0 = arith.constant 0 : i32
    %c0_i32_1 = arith.constant 0 : i32
    return %c0_i32, %c0_i32_0 : i32, i32
  }
  func.func @transform_3(%arg0: i32) -> (i32, i32) {
    %c0_i32 = arith.constant 0 : i32
    %c0_i32_0 = arith.constant 0 : i32
    %c0_i32_1 = arith.constant 0 : i32
    return %c0_i32, %c0_i32_0 : i32, i32
  }
  func.func @transform_4(%arg0: i32) -> (i32, i32) {
    %c0_i32 = arith.constant 0 : i32
    %c0_i32_0 = arith.constant 0 : i32
    %c0_i32_1 = arith.constant 0 : i32
    return %c0_i32, %c0_i32_0 : i32, i32
  }
  func.func @transform_5(%arg0: i32) -> (i32, i32) {
    %c0_i32 = arith.constant 0 : i32
    %c0_i32_0 = arith.constant 0 : i32
    %c0_i32_1 = arith.constant 0 : i32
    return %c0_i32, %c0_i32_0 : i32, i32
  }
  func.func @transform_6(%arg0: i32) -> (i32, i32) {
    %c0_i32 = arith.constant 0 : i32
    %c0_i32_0 = arith.constant 0 : i32
    %c0_i32_1 = arith.constant 0 : i32
    return %c0_i32, %c0_i32_0 : i32, i32
  }
  func.func @transform_7(%arg0: i32) -> (i32, i32) {
    %c0_i32 = arith.constant 0 : i32
    %c0_i32_0 = arith.constant 0 : i32
    %c0_i32_1 = arith.constant 0 : i32
    return %c0_i32, %c0_i32_0 : i32, i32
  }
  func.func @transform_8(%arg0: i32) -> (i32, i32) {
    %c0_i32 = arith.constant 0 : i32
    %c0_i32_0 = arith.constant 0 : i32
    return %arg0, %c0_i32 : i32, i32
  }
}

</mosaic_0001>

<llo_original>
// kernel: tpu_custom_call.1
$region0: #{tpu_custom_call.1}
  #allocation0 [shape = 'u32[]', space=smem, size = 0x4, offset = 0x4, fixed_abs, tag = 'smem constant byte address 0x4 - core index']
  #allocation1 [shape = 'u32[144,128]{1,0:T(1,128)}', space=vmem, size = 0x12000, scoped, tag = 'internal scratch']
  %s0 = inlined_call_operand.vmem [shape: bf16[16,768], index: 0, kind: input, shape index: {}]
  %s1 = inlined_call_operand.vmem [shape: bf16[1,768], index: 1, kind: input, shape index: {}]
  %s2 = inlined_call_operand.hbm [shape: bf16[768,128], index: 2, kind: input, shape index: {}]
  %s3 = inlined_call_operand.vmem [shape: f32[1,128], index: 3, kind: input, shape index: {}]
  %s4 = inlined_call_operand.vmem [shape: f32[128,64], index: 4, kind: input, shape index: {}]
  %s5 = inlined_call_operand.vmem [shape: f32[1,64], index: 5, kind: input, shape index: {}]
  %s6 = inlined_call_operand.vmem [shape: f32[64,2], index: 6, kind: input, shape index: {}]
  %s7 = inlined_call_operand.vmem [shape: f32[1,2], index: 7, kind: input, shape index: {}]
  %s8 = inlined_call_operand.vmem [shape: f32[16,6], index: 8, kind: output, shape index: {}]
  %s9 = sld [smem:[#allocation0]]
  $region46: #{tpu_custom_call.1} parent=0
    _
  %s11 = ssub.s32 1, %s9
  %s12 = scalar_select 0, %s11, %s9
  $region1: #{tpu_custom_call.1} parent=0
    #allocation2 [shape = 'u8[196608]{0}', space=vmem, size = 0x30000, scoped, tag = 'input window, operand 2, single buffered']
    #allocation3 [shape = 's32[1]{0}', space=sflag, size = 0x4, scoped, tag = 'scoped memory for tpu_custom_call.1']
    %13 = vsyncpa [#allocation3], 0
    // Predicated region
    $region2: #{tpu_custom_call.1} parent=1 // pred_check
      _
    $region3: #{tpu_custom_call.1} parent=1 // pred_check_branch
      %15 = sbr.rel (0) target = $region5
    $region4: #{tpu_custom_call.1} parent=1 // pred_region
      _
    $region5: #{tpu_custom_call.1} parent=1 // pred_fallthru
      _
    // Predicated region
    $region6: #{tpu_custom_call.1} parent=1 // pred_check
      _
    $region7: #{tpu_custom_call.1} parent=1 // pred_check_branch
      %17 = sbr.rel (0) target = $region9
    $region8: #{tpu_custom_call.1} parent=1 // pred_region
      _
    $region9: #{tpu_custom_call.1} parent=1 // pred_fallthru
      _
    // Predicated region
    $region10: #{tpu_custom_call.1} parent=1 // pred_check
      _
    $region11: #{tpu_custom_call.1} parent=1 // pred_check_branch
      %19 = sbr.rel (0) target = $region13
    $region12: #{tpu_custom_call.1} parent=1 // pred_region
      %s21 = ssub.s32 6144, 6144
      %22 = vsyncadd [#allocation3], %s21
      %s23 = sshll.u32 [#allocation2], 4
      %s24 = int_to_ptr.vmem [resolvable:$true] %s23
      %29 = dma.hbm_to_vmem [thread:$0]  %s2, 6144, %s24, [#allocation3], 64, 64, 4
    $region13: #{tpu_custom_call.1} parent=1 // pred_fallthru
      _
    // Predicated region
    $region14: #{tpu_custom_call.1} parent=1 // pred_check
      _
    $region15: #{tpu_custom_call.1} parent=1 // pred_check_branch
      %31 = sbr.rel (0) target = $region17
    $region16: #{tpu_custom_call.1} parent=1 // pred_region
      _
    $region17: #{tpu_custom_call.1} parent=1 // pred_fallthru
      _
    // Predicated region
    $region18: #{tpu_custom_call.1} parent=1 // pred_check
      _
    $region19: #{tpu_custom_call.1} parent=1 // pred_check_branch
      %33 = sbr.rel (0) target = $region21
    $region20: #{tpu_custom_call.1} parent=1 // pred_region
      _
    $region21: #{tpu_custom_call.1} parent=1 // pred_fallthru
      _
    // Predicated region
    $region22: #{tpu_custom_call.1} parent=1 // pred_check
      _
    $region23: #{tpu_custom_call.1} parent=1 // pred_check_branch
      %35 = sbr.rel (0) target = $region25
    $region24: #{tpu_custom_call.1} parent=1 // pred_region
      _
    $region25: #{tpu_custom_call.1} parent=1 // pred_fallthru
      _
    // Predicated region
    $region26: #{tpu_custom_call.1} parent=1 // pred_check
      _
    $region27: #{tpu_custom_call.1} parent=1 // pred_check_branch
      %37 = sbr.rel (0) target = $region29
    $region28: #{tpu_custom_call.1} parent=1 // pred_region
      _
    $region29: #{tpu_custom_call.1} parent=1 // pred_fallthru
      _
    // Predicated region
    $region30: #{tpu_custom_call.1} parent=1 // pred_check
      _
    $region31: #{tpu_custom_call.1} parent=1 // pred_check_branch
      %39 = sbr.rel (0) target = $region33
    $region32: #{tpu_custom_call.1} parent=1 // pred_region
      _
    $region33: #{tpu_custom_call.1} parent=1 // pred_fallthru
      _
    // Predicated region
    $region34: #{tpu_custom_call.1} parent=1 // pred_check
      _
    $region35: #{tpu_custom_call.1} parent=1 // pred_check_branch
      %41 = sbr.rel (0) target = $region37
    $region36: #{tpu_custom_call.1} parent=1 // pred_region
      %42 = dma.done [#allocation3], 6144
    $region37: #{tpu_custom_call.1} parent=1 // pred_fallthru
      _
    %v44 = vld [vmem:[%s0] sm:$0xff]
    %v45 = vld [vmem:[%s0 + $0x8] sm:$0xff]
    %v46 = vld [vmem:[%s0 + $0x10] sm:$0xff]
    %v47 = vld [vmem:[%s0 + $0x18] sm:$0xff]
    %v48 = vld [vmem:[%s0 + $0x20] sm:$0xff]
    %v49 = vld [vmem:[%s0 + $0x28] sm:$0xff]
    %v50 = vld [vmem:[#allocation2] sm:$0xf]
    %v51 = vld [vmem:[#allocation2 + $0x4] sm:$0xf]
    %v52 = vld [vmem:[#allocation2 + $0x8] sm:$0xf]
    %v53 = vld [vmem:[#allocation2 + $0xc] sm:$0xf]
    %v54 = vld [vmem:[#allocation2 + $0x10] sm:$0xf]
    %v55 = vld [vmem:[#allocation2 + $0x14] sm:$0xf]
    %v56 = vld [vmem:[#allocation2 + $0x18] sm:$0xf]
    %v57 = vld [vmem:[#allocation2 + $0x1c] sm:$0xf]
    %v58 = vld [vmem:[#allocation2 + $0x20] sm:$0xf]
    %v59 = vld [vmem:[#allocation2 + $0x24] sm:$0xf]
    %v60 = vld [vmem:[#allocation2 + $0x28] sm:$0xf]
    %v61 = vld [vmem:[#allocation2 + $0x2c] sm:$0xf]
    %v62 = vld [vmem:[#allocation2 + $0x30] sm:$0xf]
    %v63 = vld [vmem:[#allocation2 + $0x34] sm:$0xf]
    %v64 = vld [vmem:[#allocation2 + $0x38] sm:$0xf]
    %v65 = vld [vmem:[#allocation2 + $0x3c] sm:$0xf]
    %v66 = vld [vmem:[#allocation2 + $0x40] sm:$0xf]
    %v67 = vld [vmem:[#allocation2 + $0x44] sm:$0xf]
    %v68 = vld [vmem:[#allocation2 + $0x48] sm:$0xf]
    %v69 = vld [vmem:[#allocation2 + $0x4c] sm:$0xf]
    %v70 = vld [vmem:[#allocation2 + $0x50] sm:$0xf]
    %v71 = vld [vmem:[#allocation2 + $0x54] sm:$0xf]
    %v72 = vld [vmem:[#allocation2 + $0x58] sm:$0xf]
    %v73 = vld [vmem:[#allocation2 + $0x5c] sm:$0xf]
    %v74 = vld [vmem:[#allocation2 + $0x60] sm:$0xf]
    %v75 = vld [vmem:[#allocation2 + $0x64] sm:$0xf]
    %v76 = vld [vmem:[#allocation2 + $0x68] sm:$0xf]
    %v77 = vld [vmem:[#allocation2 + $0x6c] sm:$0xf]
    %v78 = vld [vmem:[#allocation2 + $0x70] sm:$0xf]
    %v79 = vld [vmem:[#allocation2 + $0x74] sm:$0xf]
    %v80 = vld [vmem:[#allocation2 + $0x78] sm:$0xf]
    %v81 = vld [vmem:[#allocation2 + $0x7c] sm:$0xf]
    %v82 = vld [vmem:[#allocation2 + $0x80] sm:$0xf]
    %v83 = vld [vmem:[#allocation2 + $0x84] sm:$0xf]
    %v84 = vld [vmem:[#allocation2 + $0x88] sm:$0xf]
    %v85 = vld [vmem:[#allocation2 + $0x8c] sm:$0xf]
    %v86 = vld [vmem:[#allocation2 + $0x90] sm:$0xf]
    %v87 = vld [vmem:[#allocation2 + $0x94] sm:$0xf]
    %v88 = vld [vmem:[#allocation2 + $0x98] sm:$0xf]
    %v89 = vld [vmem:[#allocation2 + $0x9c] sm:$0xf]
    %v90 = vld [vmem:[#allocation2 + $0xa0] sm:$0xf]
    %v91 = vld [vmem:[#allocation2 + $0xa4] sm:$0xf]
    %v92 = vld [vmem:[#allocation2 + $0xa8] sm:$0xf]
    %v93 = vld [vmem:[#allocation2 + $0xac] sm:$0xf]
    %v94 = vld [vmem:[#allocation2 + $0xb0] sm:$0xf]
    %v95 = vld [vmem:[#allocation2 + $0xb4] sm:$0xf]
    %v96 = vld [vmem:[#allocation2 + $0xb8] sm:$0xf]
    %v97 = vld [vmem:[#allocation2 + $0xbc] sm:$0xf]
    %v98 = vld [vmem:[#allocation2 + $0xc0] sm:$0xf]
    %v99 = vld [vmem:[#allocation2 + $0xc4] sm:$0xf]
    %v100 = vld [vmem:[#allocation2 + $0xc8] sm:$0xf]
    %v101 = vld [vmem:[#allocation2 + $0xcc] sm:$0xf]
    %v102 = vld [vmem:[#allocation2 + $0xd0] sm:$0xf]
    %v103 = vld [vmem:[#allocation2 + $0xd4] sm:$0xf]
    %v104 = vld [vmem:[#allocation2 + $0xd8] sm:$0xf]
    %v105 = vld [vmem:[#allocation2 + $0xdc] sm:$0xf]
    %v106 = vld [vmem:[#allocation2 + $0xe0] sm:$0xf]
    %v107 = vld [vmem:[#allocation2 + $0xe4] sm:$0xf]
    %v108 = vld [vmem:[#allocation2 + $0xe8] sm:$0xf]
    %v109 = vld [vmem:[#allocation2 + $0xec] sm:$0xf]
    %v110 = vld [vmem:[#allocation2 + $0xf0] sm:$0xf]
    %v111 = vld [vmem:[#allocation2 + $0xf4] sm:$0xf]
    %v112 = vld [vmem:[#allocation2 + $0xf8] sm:$0xf]
    %v113 = vld [vmem:[#allocation2 + $0xfc] sm:$0xf]
    %v114 = vld [vmem:[#allocation2 + $0x100] sm:$0xf]
    %v115 = vld [vmem:[#allocation2 + $0x104] sm:$0xf]
    %v116 = vld [vmem:[#allocation2 + $0x108] sm:$0xf]
    %v117 = vld [vmem:[#allocation2 + $0x10c] sm:$0xf]
    %v118 = vld [vmem:[#allocation2 + $0x110] sm:$0xf]
    %v119 = vld [vmem:[#allocation2 + $0x114] sm:$0xf]
    %v120 = vld [vmem:[#allocation2 + $0x118] sm:$0xf]
    %v121 = vld [vmem:[#allocation2 + $0x11c] sm:$0xf]
    %v122 = vld [vmem:[#allocation2 + $0x120] sm:$0xf]
    %v123 = vld [vmem:[#allocation2 + $0x124] sm:$0xf]
    %v124 = vld [vmem:[#allocation2 + $0x128] sm:$0xf]
    %v125 = vld [vmem:[#allocation2 + $0x12c] sm:$0xf]
    %v126 = vld [vmem:[#allocation2 + $0x130] sm:$0xf]
    %v127 = vld [vmem:[#allocation2 + $0x134] sm:$0xf]
    %v128 = vld [vmem:[#allocation2 + $0x138] sm:$0xf]
    %v129 = vld [vmem:[#allocation2 + $0x13c] sm:$0xf]
    %v130 = vld [vmem:[#allocation2 + $0x140] sm:$0xf]
    %v131 = vld [vmem:[#allocation2 + $0x144] sm:$0xf]
    %v132 = vld [vmem:[#allocation2 + $0x148] sm:$0xf]
    %v133 = vld [vmem:[#allocation2 + $0x14c] sm:$0xf]
    %v134 = vld [vmem:[#allocation2 + $0x150] sm:$0xf]
    %v135 = vld [vmem:[#allocation2 + $0x154] sm:$0xf]
    %v136 = vld [vmem:[#allocation2 + $0x158] sm:$0xf]
    %v137 = vld [vmem:[#allocation2 + $0x15c] sm:$0xf]
    %v138 = vld [vmem:[#allocation2 + $0x160] sm:$0xf]
    %v139 = vld [vmem:[#allocation2 + $0x164] sm:$0xf]
    %v140 = vld [vmem:[#allocation2 + $0x168] sm:$0xf]
    %v141 = vld [vmem:[#allocation2 + $0x16c] sm:$0xf]
    %v142 = vld [vmem:[#allocation2 + $0x170] sm:$0xf]
    %v143 = vld [vmem:[#allocation2 + $0x174] sm:$0xf]
    %v144 = vld [vmem:[#allocation2 + $0x178] sm:$0xf]
    %v145 = vld [vmem:[#allocation2 + $0x17c] sm:$0xf]
    %v146 = vld [vmem:[%s3] sm:$0x1]
    %v148 = vlaneseq
    %v149 = vshrl.u32 %v148, 7
    %v150 = vsub.s32 0, %v149
    %v151 = vrot.slane %v146, %v150
    %v159 = vunpack.c.l.b16 %v44
    %v160 = vunpack.c.h.b16 %v44
    %v161 = vunpack.c.l.b16 %v45
    %v162 = vunpack.c.h.b16 %v45
    %v163 = vunpack.c.l.b16 %v46
    %v164 = vunpack.c.h.b16 %v46
    %v165 = vunpack.c.l.b16 %v47
    %v166 = vunpack.c.h.b16 %v47
    %v167 = vunpack.c.l.b16 %v48
    %v168 = vunpack.c.h.b16 %v48
    %v169 = vunpack.c.l.b16 %v49
    %v170 = vunpack.c.h.b16 %v49
    %v171 = vpack.c.b16 %v165, %v159
    %v172 = vpack.c.b16 %v166, %v160
    %v173 = vpack.c.b16 %v167, %v161
    %v174 = vpack.c.b16 %v168, %v162
    %v175 = vpack.c.b16 %v169, %v163
    %v176 = vpack.c.b16 %v170, %v164
    %v279 = vunpack.c.l.b16 %v50
    %v280 = vunpack.c.l.b16 %v51
    %v281 = vunpack.c.l.b16 %v52
    %v282 = vunpack.c.l.b16 %v53
    %v283 = vunpack.c.l.b16 %v54
    %v284 = vunpack.c.l.b16 %v55
    %v285 = vunpack.c.l.b16 %v56
    %v286 = vunpack.c.l.b16 %v57
    %v287 = vunpack.c.l.b16 %v58
    %v288 = vunpack.c.l.b16 %v59
    %v289 = vunpack.c.l.b16 %v60
    %v290 = vunpack.c.l.b16 %v61
    %v291 = vunpack.c.l.b16 %v62
    %v292 = vunpack.c.l.b16 %v63
    %v293 = vunpack.c.l.b16 %v64
    %v294 = vunpack.c.l.b16 %v65
    %v295 = vunpack.c.l.b16 %v66
    %v296 = vunpack.c.l.b16 %v67
    %v297 = vunpack.c.l.b16 %v68
    %v298 = vunpack.c.l.b16 %v69
    %v299 = vunpack.c.l.b16 %v70
    %v300 = vunpack.c.l.b16 %v71
    %v301 = vunpack.c.l.b16 %v72
    %v302 = vunpack.c.l.b16 %v73
    %v303 = vunpack.c.l.b16 %v74
    %v304 = vunpack.c.l.b16 %v75
    %v305 = vunpack.c.l.b16 %v76
    %v306 = vunpack.c.l.b16 %v77
    %v307 = vunpack.c.l.b16 %v78
    %v308 = vunpack.c.l.b16 %v79
    %v309 = vunpack.c.l.b16 %v80
    %v310 = vunpack.c.l.b16 %v81
    %v311 = vunpack.c.l.b16 %v82
    %v312 = vunpack.c.l.b16 %v83
    %v313 = vunpack.c.l.b16 %v84
    %v314 = vunpack.c.l.b16 %v85
    %v315 = vunpack.c.l.b16 %v86
    %v316 = vunpack.c.l.b16 %v87
    %v317 = vunpack.c.l.b16 %v88
    %v318 = vunpack.c.l.b16 %v89
    %v319 = vunpack.c.l.b16 %v90
    %v320 = vunpack.c.l.b16 %v91
    %v321 = vunpack.c.l.b16 %v92
    %v322 = vunpack.c.l.b16 %v93
    %v323 = vunpack.c.l.b16 %v94
    %v324 = vunpack.c.l.b16 %v95
    %v325 = vunpack.c.l.b16 %v96
    %v326 = vunpack.c.l.b16 %v97
    %v327 = vunpack.c.l.b16 %v98
    %v328 = vunpack.c.l.b16 %v99
    %v329 = vunpack.c.l.b16 %v100
    %v330 = vunpack.c.l.b16 %v101
    %v331 = vunpack.c.l.b16 %v102
    %v332 = vunpack.c.l.b16 %v103
    %v333 = vunpack.c.l.b16 %v104
    %v334 = vunpack.c.l.b16 %v105
    %v335 = vunpack.c.l.b16 %v106
    %v336 = vunpack.c.l.b16 %v107
    %v337 = vunpack.c.l.b16 %v108
    %v338 = vunpack.c.l.b16 %v109
    %v339 = vunpack.c.l.b16 %v110
    %v340 = vunpack.c.l.b16 %v111
    %v341 = vunpack.c.l.b16 %v112
    %v342 = vunpack.c.l.b16 %v113
    %v343 = vunpack.c.l.b16 %v114
    %v344 = vunpack.c.l.b16 %v115
    %v345 = vunpack.c.l.b16 %v116
    %v346 = vunpack.c.l.b16 %v117
    %v347 = vunpack.c.l.b16 %v118
    %v348 = vunpack.c.l.b16 %v119
    %v349 = vunpack.c.l.b16 %v120
    %v350 = vunpack.c.l.b16 %v121
    %v351 = vunpack.c.l.b16 %v122
    %v352 = vunpack.c.l.b16 %v123
    %v353 = vunpack.c.l.b16 %v124
    %v354 = vunpack.c.l.b16 %v125
    %v355 = vunpack.c.l.b16 %v126
    %v356 = vunpack.c.l.b16 %v127
    %v357 = vunpack.c.l.b16 %v128
    %v358 = vunpack.c.l.b16 %v129
    %v359 = vunpack.c.l.b16 %v130
    %v360 = vunpack.c.l.b16 %v131
    %v361 = vunpack.c.l.b16 %v132
    %v362 = vunpack.c.l.b16 %v133
    %v363 = vunpack.c.l.b16 %v134
    %v364 = vunpack.c.l.b16 %v135
    %v365 = vunpack.c.l.b16 %v136
    %v366 = vunpack.c.l.b16 %v137
    %v367 = vunpack.c.l.b16 %v138
    %v368 = vunpack.c.l.b16 %v139
    %v369 = vunpack.c.l.b16 %v140
    %v370 = vunpack.c.l.b16 %v141
    %v371 = vunpack.c.l.b16 %v142
    %v372 = vunpack.c.l.b16 %v143
    %v373 = vunpack.c.l.b16 %v144
    %v374 = vunpack.c.l.b16 %v145
    %v375 = vpack.c.b16 %v280, %v279
    %v376 = vpack.c.b16 %v282, %v281
    %v377 = vpack.c.b16 %v284, %v283
    %v378 = vpack.c.b16 %v286, %v285
    %v379 = vpack.c.b16 %v288, %v287
    %v380 = vpack.c.b16 %v290, %v289
    %v381 = vpack.c.b16 %v292, %v291
    %v382 = vpack.c.b16 %v294, %v293
    %v383 = vpack.c.b16 %v296, %v295
    %v384 = vpack.c.b16 %v298, %v297
    %v385 = vpack.c.b16 %v300, %v299
    %v386 = vpack.c.b16 %v302, %v301
    %v387 = vpack.c.b16 %v304, %v303
    %v388 = vpack.c.b16 %v306, %v305
    %v389 = vpack.c.b16 %v308, %v307
    %v390 = vpack.c.b16 %v310, %v309
    %v391 = vpack.c.b16 %v312, %v311
    %v392 = vpack.c.b16 %v314, %v313
    %v393 = vpack.c.b16 %v316, %v315
    %v394 = vpack.c.b16 %v318, %v317
    %v395 = vpack.c.b16 %v320, %v319
    %v396 = vpack.c.b16 %v322, %v321
    %v397 = vpack.c.b16 %v324, %v323
    %v398 = vpack.c.b16 %v326, %v325
    %v399 = vpack.c.b16 %v328, %v327
    %v400 = vpack.c.b16 %v330, %v329
    %v401 = vpack.c.b16 %v332, %v331
    %v402 = vpack.c.b16 %v334, %v333
    %v403 = vpack.c.b16 %v336, %v335
    %v404 = vpack.c.b16 %v338, %v337
    %v405 = vpack.c.b16 %v340, %v339
    %v406 = vpack.c.b16 %v342, %v341
    %v407 = vpack.c.b16 %v344, %v343
    %v408 = vpack.c.b16 %v346, %v345
    %v409 = vpack.c.b16 %v348, %v347
    %v410 = vpack.c.b16 %v350, %v349
    %v411 = vpack.c.b16 %v352, %v351
    %v412 = vpack.c.b16 %v354, %v353
    %v413 = vpack.c.b16 %v356, %v355
    %v414 = vpack.c.b16 %v358, %v357
    %v415 = vpack.c.b16 %v360, %v359
    %v416 = vpack.c.b16 %v362, %v361
    %v417 = vpack.c.b16 %v364, %v363
    %v418 = vpack.c.b16 %v366, %v365
    %v419 = vpack.c.b16 %v368, %v367
    %v420 = vpack.c.b16 %v370, %v369
    %v421 = vpack.c.b16 %v372, %v371
    %v422 = vpack.c.b16 %v374, %v373
    %471 = vmatprep.subr.bf16.mxu0 0
    %472 = vmatpush1.bf16.msra.mxu0 %v382
    %473 = vmatprep.subr.bf16.mxu0 0
    %474 = vmatpush1.bf16.msra.mxu0 %v381
    %475 = vmatprep.subr.bf16.mxu0 0
    %476 = vmatpush1.bf16.msra.mxu0 %v380
    %477 = vmatprep.subr.bf16.mxu0 0
    %478 = vmatpush1.bf16.msra.mxu0 %v379
    %479 = vmatprep.subr.bf16.mxu0 0
    %480 = vmatpush1.bf16.msra.mxu0 %v378
    %481 = vmatprep.subr.bf16.mxu0 0
    %482 = vmatpush1.bf16.msra.mxu0 %v377
    %483 = vmatprep.subr.bf16.mxu0 0
    %484 = vmatpush1.bf16.msra.mxu0 %v376
    %485 = vmatprep.subr.bf16.mxu0 0
    %486 = vmatpush1.bf16.msra.mxu0 %v375
    %487 = vmatprep.subr.bf16.mxu0 0
    %488 = vmatpush2.bf16.msra.mxu0 %v390
    %489 = vmatprep.subr.bf16.mxu0 0
    %490 = vmatpush2.bf16.msra.mxu0 %v389
    %491 = vmatprep.subr.bf16.mxu0 0
    %492 = vmatpush2.bf16.msra.mxu0 %v388
    %493 = vmatprep.subr.bf16.mxu0 0
    %494 = vmatpush2.bf16.msra.mxu0 %v387
    %495 = vmatprep.subr.bf16.mxu0 0
    %496 = vmatpush2.bf16.msra.mxu0 %v386
    %497 = vmatprep.subr.bf16.mxu0 0
    %498 = vmatpush2.bf16.msra.mxu0 %v385
    %499 = vmatprep.subr.bf16.mxu0 0
    %500 = vmatpush2.bf16.msra.mxu0 %v384
    %501 = vmatprep.subr.bf16.mxu0 0
    %502 = vmatpush2.bf16.msra.mxu0 %v383
    %503 = vmatprep.mubr.bf16.mxu0 %v172
    %504 = vmatmul.mubr.bf16.gmra.mxu0 %v171
    %v505 = vpop.f32.mrf.mxu0
    %v506 = vadd.f32 %v151, %v505
    %v507 = vpop.f32.mrf.mxu0
    %v508 = vpop.f32.mrf.mxu0
    %v509 = vadd.f32 %v151, %v508
    %v510 = vpop.f32.mrf.mxu0
    %511 = vdwg.mxu0
    %512 = vmatprep.subr.bf16.mxu0 0
    %513 = vmatpush1.bf16.msra.mxu0 %v398
    %514 = vmatprep.subr.bf16.mxu0 0
    %515 = vmatpush1.bf16.msra.mxu0 %v397
    %516 = vmatprep.subr.bf16.mxu0 0
    %517 = vmatpush1.bf16.msra.mxu0 %v396
    %518 = vmatprep.subr.bf16.mxu0 0
    %519 = vmatpush1.bf16.msra.mxu0 %v395
    %520 = vmatprep.subr.bf16.mxu0 0
    %521 = vmatpush1.bf16.msra.mxu0 %v394
    %522 = vmatprep.subr.bf16.mxu0 0
    %523 = vmatpush1.bf16.msra.mxu0 %v393
    %524 = vmatprep.subr.bf16.mxu0 0
    %525 = vmatpush1.bf16.msra.mxu0 %v392
    %526 = vmatprep.subr.bf16.mxu0 0
    %527 = vmatpush1.bf16.msra.mxu0 %v391
    %528 = vmatprep.subr.bf16.mxu0 0
    %529 = vmatpush2.bf16.msra.mxu0 %v406
    %530 = vmatprep.subr.bf16.mxu0 0
    %531 = vmatpush2.bf16.msra.mxu0 %v405
    %532 = vmatprep.subr.bf16.mxu0 0
    %533 = vmatpush2.bf16.msra.mxu0 %v404
    %534 = vmatprep.subr.bf16.mxu0 0
    %535 = vmatpush2.bf16.msra.mxu0 %v403
    %536 = vmatprep.subr.bf16.mxu0 0
    %537 = vmatpush2.bf16.msra.mxu0 %v402
    %538 = vmatprep.subr.bf16.mxu0 0
    %539 = vmatpush2.bf16.msra.mxu0 %v401
    %540 = vmatprep.subr.bf16.mxu0 0
    %541 = vmatpush2.bf16.msra.mxu0 %v400
    %542 = vmatprep.subr.bf16.mxu0 0
    %543 = vmatpush2.bf16.msra.mxu0 %v399
    %544 = vmatprep.mubr.bf16.mxu0 %v174
    %545 = vmatmul.mubr.bf16.gmra.mxu0 %v173
    %v546 = vpop.f32.mrf.mxu0
    %v547 = vadd.f32 %v506, %v546
    %v548 = vpop.f32.mrf.mxu0
    %v549 = vpop.f32.mrf.mxu0
    %v550 = vadd.f32 %v509, %v549
    %v551 = vpop.f32.mrf.mxu0
    %552 = vdwg.mxu0
    %553 = vmatprep.subr.bf16.mxu0 0
    %554 = vmatpush1.bf16.msra.mxu0 %v414
    %555 = vmatprep.subr.bf16.mxu0 0
    %556 = vmatpush1.bf16.msra.mxu0 %v413
    %557 = vmatprep.subr.bf16.mxu0 0
    %558 = vmatpush1.bf16.msra.mxu0 %v412
    %559 = vmatprep.subr.bf16.mxu0 0
    %560 = vmatpush1.bf16.msra.mxu0 %v411
    %561 = vmatprep.subr.bf16.mxu0 0
    %562 = vmatpush1.bf16.msra.mxu0 %v410
    %563 = vmatprep.subr.bf16.mxu0 0
    %564 = vmatpush1.bf16.msra.mxu0 %v409
    %565 = vmatprep.subr.bf16.mxu0 0
    %566 = vmatpush1.bf16.msra.mxu0 %v408
    %567 = vmatprep.subr.bf16.mxu0 0
    %568 = vmatpush1.bf16.msra.mxu0 %v407
    %569 = vmatprep.subr.bf16.mxu0 0
    %570 = vmatpush2.bf16.msra.mxu0 %v422
    %571 = vmatprep.subr.bf16.mxu0 0
    %572 = vmatpush2.bf16.msra.mxu0 %v421
    %573 = vmatprep.subr.bf16.mxu0 0
    %574 = vmatpush2.bf16.msra.mxu0 %v420
    %575 = vmatprep.subr.bf16.mxu0 0
    %576 = vmatpush2.bf16.msra.mxu0 %v419
    %577 = vmatprep.subr.bf16.mxu0 0
    %578 = vmatpush2.bf16.msra.mxu0 %v418
    %579 = vmatprep.subr.bf16.mxu0 0
    %580 = vmatpush2.bf16.msra.mxu0 %v417
    %581 = vmatprep.subr.bf16.mxu0 0
    %582 = vmatpush2.bf16.msra.mxu0 %v416
    %583 = vmatprep.subr.bf16.mxu0 0
    %584 = vmatpush2.bf16.msra.mxu0 %v415
    %585 = vmatprep.mubr.bf16.mxu0 %v176
    %586 = vmatmul.mubr.bf16.gmra.mxu0 %v175
    %v587 = vpop.f32.mrf.mxu0
    %v588 = vadd.f32 %v547, %v587
    %v589 = vpop.f32.mrf.mxu0
    %v590 = vpop.f32.mrf.mxu0
    %v591 = vadd.f32 %v550, %v590
    %v592 = vpop.f32.mrf.mxu0
    %593 = vdwg.mxu0
    %v594 = vld [vmem:[%s1] sm:$0x3f]
    %v596 = vcombine.high %v594, %v594
    %v598 = vunpack.c.l.s4 1966171168
    %v599 = vunpack.c.0.s8 %v598
    %v600 = vlaneseq
    %v601 = vshrl.u32 %v600, 7
    %v602 = vsub.s32 %v599, %v601
    %v603 = vrot.slane %v594, %v602
    %v605 = vunpack.c.l.s4 1966171168
    %v606 = vunpack.c.0.s8 %v605
    %v607 = vlaneseq
    %v608 = vshrl.u32 %v607, 7
    %v609 = vsub.s32 %v606, %v608
    %v610 = vrot.slane %v596, %v609
    %v611 = vcombine.high %v603, %v603
    %v612 = vcombine.high %v610, %v610
    %v614 = vunpack.c.l.s4 1966171168
    %v615 = vunpack.c.0.s8 %v614
    %v616 = vlaneseq
    %v617 = vshrl.u32 %v616, 7
    %v618 = vsub.s32 %v615, %v617
    %v619 = vrot.slane %v603, %v618
    %v621 = vunpack.c.l.s4 1966171168
    %v622 = vunpack.c.0.s8 %v621
    %v623 = vlaneseq
    %v624 = vshrl.u32 %v623, 7
    %v625 = vsub.s32 %v622, %v624
    %v626 = vrot.slane %v610, %v625
    %v628 = vunpack.c.l.s4 1966171168
    %v629 = vunpack.c.0.s8 %v628
    %v630 = vlaneseq
    %v631 = vshrl.u32 %v630, 7
    %v632 = vsub.s32 %v629, %v631
    %v633 = vrot.slane %v611, %v632
    %v635 = vunpack.c.l.s4 1966171168
    %v636 = vunpack.c.0.s8 %v635
    %v637 = vlaneseq
    %v638 = vshrl.u32 %v637, 7
    %v639 = vsub.s32 %v636, %v638
    %v640 = vrot.slane %v612, %v639
    %v641 = vcombine.high %v619, %v619
    %v642 = vcombine.high %v633, %v633
    %649 = vmatprep.subr.bf16.mxu0 0
    %650 = vmatpush1.bf16.msra.mxu0 %v382
    %651 = vmatprep.subr.bf16.mxu0 0
    %652 = vmatpush1.bf16.msra.mxu0 %v381
    %653 = vmatprep.subr.bf16.mxu0 0
    %654 = vmatpush1.bf16.msra.mxu0 %v380
    %655 = vmatprep.subr.bf16.mxu0 0
    %656 = vmatpush1.bf16.msra.mxu0 %v379
    %657 = vmatprep.subr.bf16.mxu0 0
    %658 = vmatpush1.bf16.msra.mxu0 %v378
    %659 = vmatprep.subr.bf16.mxu0 0
    %660 = vmatpush1.bf16.msra.mxu0 %v377
    %661 = vmatprep.subr.bf16.mxu0 0
    %662 = vmatpush1.bf16.msra.mxu0 %v376
    %663 = vmatprep.subr.bf16.mxu0 0
    %664 = vmatpush1.bf16.msra.mxu0 %v375
    %665 = vmatprep.subr.bf16.mxu0 0
    %666 = vmatpush2.bf16.msra.mxu0 %v390
    %667 = vmatprep.subr.bf16.mxu0 0
    %668 = vmatpush2.bf16.msra.mxu0 %v389
    %669 = vmatprep.subr.bf16.mxu0 0
    %670 = vmatpush2.bf16.msra.mxu0 %v388
    %671 = vmatprep.subr.bf16.mxu0 0
    %672 = vmatpush2.bf16.msra.mxu0 %v387
    %673 = vmatprep.subr.bf16.mxu0 0
    %674 = vmatpush2.bf16.msra.mxu0 %v386
    %675 = vmatprep.subr.bf16.mxu0 0
    %676 = vmatpush2.bf16.msra.mxu0 %v385
    %677 = vmatprep.subr.bf16.mxu0 0
    %678 = vmatpush2.bf16.msra.mxu0 %v384
    %679 = vmatprep.subr.bf16.mxu0 0
    %680 = vmatpush2.bf16.msra.mxu0 %v383
    %681 = vmatprep.mubr.bf16.mxu0 %v633
    %682 = vmatmul.mubr.bf16.gmra.mxu0 %v619
    %v683 = vpop.f32.mrf.mxu0
    %v684 = vadd.f32 0.0, %v683
    %v685 = vpop.f32.mrf.mxu0
    %v686 = vpop.f32.mrf.mxu0
    %v687 = vpop.f32.mrf.mxu0
    %688 = vdwg.mxu0
    %689 = vmatprep.subr.bf16.mxu0 0
    %690 = vmatpush1.bf16.msra.mxu0 %v398
    %691 = vmatprep.subr.bf16.mxu0 0
    %692 = vmatpush1.bf16.msra.mxu0 %v397
    %693 = vmatprep.subr.bf16.mxu0 0
    %694 = vmatpush1.bf16.msra.mxu0 %v396
    %695 = vmatprep.subr.bf16.mxu0 0
    %696 = vmatpush1.bf16.msra.mxu0 %v395
    %697 = vmatprep.subr.bf16.mxu0 0
    %698 = vmatpush1.bf16.msra.mxu0 %v394
    %699 = vmatprep.subr.bf16.mxu0 0
    %700 = vmatpush1.bf16.msra.mxu0 %v393
    %701 = vmatprep.subr.bf16.mxu0 0
    %702 = vmatpush1.bf16.msra.mxu0 %v392
    %703 = vmatprep.subr.bf16.mxu0 0
    %704 = vmatpush1.bf16.msra.mxu0 %v391
    %705 = vmatprep.subr.bf16.mxu0 0
    %706 = vmatpush2.bf16.msra.mxu0 %v406
    %707 = vmatprep.subr.bf16.mxu0 0
    %708 = vmatpush2.bf16.msra.mxu0 %v405
    %709 = vmatprep.subr.bf16.mxu0 0
    %710 = vmatpush2.bf16.msra.mxu0 %v404
    %711 = vmatprep.subr.bf16.mxu0 0
    %712 = vmatpush2.bf16.msra.mxu0 %v403
    %713 = vmatprep.subr.bf16.mxu0 0
    %714 = vmatpush2.bf16.msra.mxu0 %v402
    %715 = vmatprep.subr.bf16.mxu0 0
    %716 = vmatpush2.bf16.msra.mxu0 %v401
    %717 = vmatprep.subr.bf16.mxu0 0
    %718 = vmatpush2.bf16.msra.mxu0 %v400
    %719 = vmatprep.subr.bf16.mxu0 0
    %720 = vmatpush2.bf16.msra.mxu0 %v399
    %721 = vmatprep.mubr.bf16.mxu0 %v642
    %722 = vmatmul.mubr.bf16.gmra.mxu0 %v641
    %v723 = vpop.f32.mrf.mxu0
    %v724 = vadd.f32 %v684, %v723
    %v725 = vpop.f32.mrf.mxu0
    %v726 = vpop.f32.mrf.mxu0
    %v727 = vpop.f32.mrf.mxu0
    %728 = vdwg.mxu0
    %729 = vmatprep.subr.bf16.mxu0 0
    %730 = vmatpush1.bf16.msra.mxu0 %v414
    %731 = vmatprep.subr.bf16.mxu0 0
    %732 = vmatpush1.bf16.msra.mxu0 %v413
    %733 = vmatprep.subr.bf16.mxu0 0
    %734 = vmatpush1.bf16.msra.mxu0 %v412
    %735 = vmatprep.subr.bf16.mxu0 0
    %736 = vmatpush1.bf16.msra.mxu0 %v411
    %737 = vmatprep.subr.bf16.mxu0 0
    %738 = vmatpush1.bf16.msra.mxu0 %v410
    %739 = vmatprep.subr.bf16.mxu0 0
    %740 = vmatpush1.bf16.msra.mxu0 %v409
    %741 = vmatprep.subr.bf16.mxu0 0
    %742 = vmatpush1.bf16.msra.mxu0 %v408
    %743 = vmatprep.subr.bf16.mxu0 0
    %744 = vmatpush1.bf16.msra.mxu0 %v407
    %745 = vmatprep.subr.bf16.mxu0 0
    %746 = vmatpush2.bf16.msra.mxu0 %v422
    %747 = vmatprep.subr.bf16.mxu0 0
    %748 = vmatpush2.bf16.msra.mxu0 %v421
    %749 = vmatprep.subr.bf16.mxu0 0
    %750 = vmatpush2.bf16.msra.mxu0 %v420
    %751 = vmatprep.subr.bf16.mxu0 0
    %752 = vmatpush2.bf16.msra.mxu0 %v419
    %753 = vmatprep.subr.bf16.mxu0 0
    %754 = vmatpush2.bf16.msra.mxu0 %v418
    %755 = vmatprep.subr.bf16.mxu0 0
    %756 = vmatpush2.bf16.msra.mxu0 %v417
    %757 = vmatprep.subr.bf16.mxu0 0
    %758 = vmatpush2.bf16.msra.mxu0 %v416
    %759 = vmatprep.subr.bf16.mxu0 0
    %760 = vmatpush2.bf16.msra.mxu0 %v415
    %761 = vmatprep.mubr.bf16.mxu0 %v640
    %762 = vmatmul.mubr.bf16.gmra.mxu0 %v626
    %v763 = vpop.f32.mrf.mxu0
    %v764 = vadd.f32 %v724, %v763
    %v765 = vpop.f32.mrf.mxu0
    %v766 = vpop.f32.mrf.mxu0
    %v767 = vpop.f32.mrf.mxu0
    %768 = vdwg.mxu0
    %v769 = vmax.f32 %v588, 0.0
    %v770 = vmax.f32 %v591, 0.0
    %v771 = vlaneseq
    %v772 = vshrl.u32 %v771, 7
    %v773 = vsub.s32 0, %v772
    %v774 = vrot.slane %v764, %v773
    %v775 = vadd.f32 %v588, %v774
    %v776 = vadd.f32 %v591, %v774
    %v777 = vmax.f32 %v775, 0.0
    %v778 = vmax.f32 %v776, 0.0
    %v779 = vld [vmem:[%s4] sm:$0xff]
    %v780 = vld [vmem:[%s4 + $0x8] sm:$0xff]
    %v781 = vld [vmem:[%s4 + $0x10] sm:$0xff]
    %v782 = vld [vmem:[%s4 + $0x18] sm:$0xff]
    %v783 = vld [vmem:[%s4 + $0x20] sm:$0xff]
    %v784 = vld [vmem:[%s4 + $0x28] sm:$0xff]
    %v785 = vld [vmem:[%s4 + $0x30] sm:$0xff]
    %v786 = vld [vmem:[%s4 + $0x38] sm:$0xff]
    %v787 = vld [vmem:[%s4 + $0x40] sm:$0xff]
    %v788 = vld [vmem:[%s4 + $0x48] sm:$0xff]
    %v789 = vld [vmem:[%s4 + $0x50] sm:$0xff]
    %v790 = vld [vmem:[%s4 + $0x58] sm:$0xff]
    %v791 = vld [vmem:[%s4 + $0x60] sm:$0xff]
    %v792 = vld [vmem:[%s4 + $0x68] sm:$0xff]
    %v793 = vld [vmem:[%s4 + $0x70] sm:$0xff]
    %v794 = vld [vmem:[%s4 + $0x78] sm:$0xff]
    %v795 = vld [vmem:[%s5] sm:$0x1]
    %v797 = vlaneseq
    %v798 = vshrl.u32 %v797, 7
    %v799 = vsub.s32 0, %v798
    %v800 = vrot.slane %v795, %v799
    %802 = vmatprep.subr.mxu0 0.0
    %803 = vmatpush1.msra.mxu0 %v794
    %804 = vmatprep.subr.mxu0 0.0
    %805 = vmatpush1.msra.mxu0 %v793
    %806 = vmatprep.subr.mxu0 0.0
    %807 = vmatpush1.msra.mxu0 %v792
    %808 = vmatprep.subr.mxu0 0.0
    %809 = vmatpush1.msra.mxu0 %v791
    %810 = vmatprep.subr.mxu0 0.0
    %811 = vmatpush1.msra.mxu0 %v790
    %812 = vmatprep.subr.mxu0 0.0
    %813 = vmatpush1.msra.mxu0 %v789
    %814 = vmatprep.subr.mxu0 0.0
    %815 = vmatpush1.msra.mxu0 %v788
    %816 = vmatprep.subr.mxu0 0.0
    %817 = vmatpush1.msra.mxu0 %v787
    %818 = vmatprep.subr.mxu0 0.0
    %819 = vmatpush1.msra.mxu0 %v786
    %820 = vmatprep.subr.mxu0 0.0
    %821 = vmatpush1.msra.mxu0 %v785
    %822 = vmatprep.subr.mxu0 0.0
    %823 = vmatpush1.msra.mxu0 %v784
    %824 = vmatprep.subr.mxu0 0.0
    %825 = vmatpush1.msra.mxu0 %v783
    %826 = vmatprep.subr.mxu0 0.0
    %827 = vmatpush1.msra.mxu0 %v782
    %828 = vmatprep.subr.mxu0 0.0
    %829 = vmatpush1.msra.mxu0 %v781
    %830 = vmatprep.subr.mxu0 0.0
    %831 = vmatpush1.msra.mxu0 %v780
    %832 = vmatprep.subr.mxu0 0.0
    %833 = vmatpush1.msra.mxu0 %v779
    %834 = vmatprep.subr.mxu0 0.0
    %835 = vmatpush2.msra.mxu0 0.0
    %836 = vmatprep.subr.mxu0 0.0
    %837 = vmatpush2.msra.mxu0 0.0
    %838 = vmatprep.subr.mxu0 0.0
    %839 = vmatpush2.msra.mxu0 0.0
    %840 = vmatprep.subr.mxu0 0.0
    %841 = vmatpush2.msra.mxu0 0.0
    %842 = vmatprep.subr.mxu0 0.0
    %843 = vmatpush2.msra.mxu0 0.0
    %844 = vmatprep.subr.mxu0 0.0
    %845 = vmatpush2.msra.mxu0 0.0
    %846 = vmatprep.subr.mxu0 0.0
    %847 = vmatpush2.msra.mxu0 0.0
    %848 = vmatprep.subr.mxu0 0.0
    %849 = vmatpush2.msra.mxu0 0.0
    %850 = vmatprep.subr.mxu0 0.0
    %851 = vmatpush2.msra.mxu0 0.0
    %852 = vmatprep.subr.mxu0 0.0
    %853 = vmatpush2.msra.mxu0 0.0
    %854 = vmatprep.subr.mxu0 0.0
    %855 = vmatpush2.msra.mxu0 0.0
    %856 = vmatprep.subr.mxu0 0.0
    %857 = vmatpush2.msra.mxu0 0.0
    %858 = vmatprep.subr.mxu0 0.0
    %859 = vmatpush2.msra.mxu0 0.0
    %860 = vmatprep.subr.mxu0 0.0
    %861 = vmatpush2.msra.mxu0 0.0
    %862 = vmatprep.subr.mxu0 0.0
    %863 = vmatpush2.msra.mxu0 0.0
    %864 = vmatprep.subr.mxu0 0.0
    %865 = vmatpush2.msra.mxu0 0.0
    %866 = vmatprep.mubr.f32.mxu0 0.0
    %867 = vmatmul.mubr.f32.gmra.mxu0 %v769
    %v868 = vpop.f32.mrf.mxu0
    %v869 = vadd.f32 %v800, %v868
    %v870 = vpop.f32.mrf.mxu0
    %871 = vmatprep.mubr.f32.mxu0 0.0
    %872 = vmatmul.mubr.f32.gmra.mxu0 %v770
    %v873 = vpop.f32.mrf.mxu0
    %v874 = vadd.f32 %v800, %v873
    %v875 = vpop.f32.mrf.mxu0
    %876 = vmatprep.mubr.f32.mxu0 0.0
    %877 = vmatmul.mubr.f32.gmra.mxu0 %v777
    %v878 = vpop.f32.mrf.mxu0
    %v879 = vadd.f32 %v800, %v878
    %v880 = vpop.f32.mrf.mxu0
    %881 = vmatprep.mubr.f32.mxu0 0.0
    %882 = vmatmul.mubr.f32.gmra.mxu0 %v778
    %v883 = vpop.f32.mrf.mxu0
    %v884 = vadd.f32 %v800, %v883
    %v885 = vpop.f32.mrf.mxu0
    %886 = vdwg.mxu0
    %v887 = vmax.f32 %v869, 0.0
    %v888 = vmax.f32 %v874, 0.0
    %v889 = vmax.f32 %v879, 0.0
    %v890 = vmax.f32 %v884, 0.0
    %v891 = vld [vmem:[%s6] sm:$0xff]
    %v892 = vld [vmem:[%s6 + $0x8] sm:$0xff]
    %v893 = vld [vmem:[%s6 + $0x10] sm:$0xff]
    %v894 = vld [vmem:[%s6 + $0x18] sm:$0xff]
    %v895 = vld [vmem:[%s6 + $0x20] sm:$0xff]
    %v896 = vld [vmem:[%s6 + $0x28] sm:$0xff]
    %v897 = vld [vmem:[%s6 + $0x30] sm:$0xff]
    %v898 = vld [vmem:[%s6 + $0x38] sm:$0xff]
    %v899 = vld [vmem:[%s7] sm:$0x1]
    %v901 = vlaneseq
    %v902 = vshrl.u32 %v901, 7
    %v903 = vsub.s32 0, %v902
    %v904 = vrot.slane %v899, %v903
    %vm906 = vcmask 523264
    %v908 = vsel %vm906, %v887, 0
    %v911 = vsel %vm906, %v888, 0
    %v914 = vsel %vm906, %v889, 0
    %v917 = vsel %vm906, %v890, 0
    %919 = vmatprep.subr.mxu0 0.0
    %920 = vmatpush1.msra.mxu0 0.0
    %921 = vmatprep.subr.mxu0 0.0
    %922 = vmatpush1.msra.mxu0 0.0
    %923 = vmatprep.subr.mxu0 0.0
    %924 = vmatpush1.msra.mxu0 0.0
    %925 = vmatprep.subr.mxu0 0.0
    %926 = vmatpush1.msra.mxu0 0.0
    %927 = vmatprep.subr.mxu0 0.0
    %928 = vmatpush1.msra.mxu0 0.0
    %929 = vmatprep.subr.mxu0 0.0
    %930 = vmatpush1.msra.mxu0 0.0
    %931 = vmatprep.subr.mxu0 0.0
    %932 = vmatpush1.msra.mxu0 0.0
    %933 = vmatprep.subr.mxu0 0.0
    %934 = vmatpush1.msra.mxu0 0.0
    %935 = vmatprep.subr.mxu0 0.0
    %936 = vmatpush1.msra.mxu0 %v898
    %937 = vmatprep.subr.mxu0 0.0
    %938 = vmatpush1.msra.mxu0 %v897
    %939 = vmatprep.subr.mxu0 0.0
    %940 = vmatpush1.msra.mxu0 %v896
    %941 = vmatprep.subr.mxu0 0.0
    %942 = vmatpush1.msra.mxu0 %v895
    %943 = vmatprep.subr.mxu0 0.0
    %944 = vmatpush1.msra.mxu0 %v894
    %945 = vmatprep.subr.mxu0 0.0
    %946 = vmatpush1.msra.mxu0 %v893
    %947 = vmatprep.subr.mxu0 0.0
    %948 = vmatpush1.msra.mxu0 %v892
    %949 = vmatprep.subr.mxu0 0.0
    %950 = vmatpush1.msra.mxu0 %v891
    %951 = vmatprep.subr.mxu0 0.0
    %952 = vmatpush2.msra.mxu0 0.0
    %953 = vmatprep.subr.mxu0 0.0
    %954 = vmatpush2.msra.mxu0 0.0
    %955 = vmatprep.subr.mxu0 0.0
    %956 = vmatpush2.msra.mxu0 0.0
    %957 = vmatprep.subr.mxu0 0.0
    %958 = vmatpush2.msra.mxu0 0.0
    %959 = vmatprep.subr.mxu0 0.0
    %960 = vmatpush2.msra.mxu0 0.0
    %961 = vmatprep.subr.mxu0 0.0
    %962 = vmatpush2.msra.mxu0 0.0
    %963 = vmatprep.subr.mxu0 0.0
    %964 = vmatpush2.msra.mxu0 0.0
    %965 = vmatprep.subr.mxu0 0.0
    %966 = vmatpush2.msra.mxu0 0.0
    %967 = vmatprep.subr.mxu0 0.0
    %968 = vmatpush2.msra.mxu0 0.0
    %969 = vmatprep.subr.mxu0 0.0
    %970 = vmatpush2.msra.mxu0 0.0
    %971 = vmatprep.subr.mxu0 0.0
    %972 = vmatpush2.msra.mxu0 0.0
    %973 = vmatprep.subr.mxu0 0.0
    %974 = vmatpush2.msra.mxu0 0.0
    %975 = vmatprep.subr.mxu0 0.0
    %976 = vmatpush2.msra.mxu0 0.0
    %977 = vmatprep.subr.mxu0 0.0
    %978 = vmatpush2.msra.mxu0 0.0
    %979 = vmatprep.subr.mxu0 0.0
    %980 = vmatpush2.msra.mxu0 0.0
    %981 = vmatprep.subr.mxu0 0.0
    %982 = vmatpush2.msra.mxu0 0.0
    %983 = vmatprep.mubr.f32.mxu0 0.0
    %984 = vmatmul.mubr.f32.gmra.mxu0 %v908
    %v985 = vpop.f32.mrf.mxu0
    %v986 = vadd.f32 %v904, %v985
    %v987 = vpop.f32.mrf.mxu0
    %988 = vmatprep.mubr.f32.mxu0 0.0
    %989 = vmatmul.mubr.f32.gmra.mxu0 %v911
    %v990 = vpop.f32.mrf.mxu0
    %v991 = vadd.f32 %v904, %v990
    %v992 = vpop.f32.mrf.mxu0
    %993 = vmatprep.mubr.f32.mxu0 0.0
    %994 = vmatmul.mubr.f32.gmra.mxu0 %v914
    %v995 = vpop.f32.mrf.mxu0
    %v996 = vadd.f32 %v904, %v995
    %v997 = vpop.f32.mrf.mxu0
    %998 = vmatprep.mubr.f32.mxu0 0.0
    %999 = vmatmul.mubr.f32.gmra.mxu0 %v917
    %v1000 = vpop.f32.mrf.mxu0
    %v1001 = vadd.f32 %v904, %v1000
    %v1002 = vpop.f32.mrf.mxu0
    %1003 = vdwg.mxu0
    %1006 = vrot.lane.b32.xlu0 %v986, 1
    %v1007 = vpop.permute.xlu0 %1006
    %1008 = vrot.lane.b32.xlu0 %v991, 1
    %v1009 = vpop.permute.xlu0 %1008
    %v1012 = vsub.f32 %v986, %v1007
    %v1013 = vsub.f32 %v991, %v1009
    %v1014 = vsub.f32 0.0, %v1012
    %v1015 = vsub.f32 0.0, %v1013
    %v1016 = vmul.f32 %v1014, 1.442695
    %v1017 = vpow.pop %v1016
    %v1018 = vmul.f32 %v1015, 1.442695
    %v1019 = vpow.pop %v1018
    %v1020 = vadd.f32 %v1017, 1.0
    %v1021 = vadd.f32 %v1019, 1.0
    %v1022 = vrcp.pop %v1020
    %v1023 = vmul.f32 1.0, %v1022
    %v1024 = vrcp.pop %v1021
    %v1025 = vmul.f32 1.0, %v1024
    %v1026 = vsub.f32 1.0, %v1023
    %v1027 = vsub.f32 1.0, %v1025
    %vm1028 = vcmask 15360
    %1029 = vst.msk [vmem:[%s8] sm:$0xff] %vm1028, %v986
    %1030 = vst.msk [vmem:[%s8 + $0x8] sm:$0xff] %vm1028, %v991
    %1033 = vrot.lane.b32.xlu0 %v996, 2
    %v1034 = vpop.permute.xlu0 %1033
    %1035 = vrot.lane.b32.xlu0 %v1001, 2
    %v1036 = vpop.permute.xlu0 %1035
    %vm1039 = vcmask 31760
    %1040 = vst.msk [vmem:[%s8] sm:$0xff] %vm1039, %v1034
    %1041 = vst.msk [vmem:[%s8 + $0x8] sm:$0xff] %vm1039, %v1036
    %1044 = vrot.lane.b32.xlu0 %v1026, 3
    %v1045 = vpop.permute.xlu0 %1044
    %1046 = vrot.lane.b32.xlu0 %v1027, 3
    %v1047 = vpop.permute.xlu0 %1046
    %vm1050 = vcmask 39968
    %1051 = vst.msk [vmem:[%s8] sm:$0xff] %vm1050, %v1045
    %1052 = vst.msk [vmem:[%s8 + $0x8] sm:$0xff] %vm1050, %v1047
    %1055 = vrot.lane.b32.xlu0 %v1023, 4
    %v1056 = vpop.permute.xlu0 %1055
    %1057 = vrot.lane.b32.xlu0 %v1025, 4
    %v1058 = vpop.permute.xlu0 %1057
    %vm1061 = vcmask 48168
    %1062 = vst.msk [vmem:[%s8] sm:$0xff] %vm1061, %v1056
    %1063 = vst.msk [vmem:[%s8 + $0x8] sm:$0xff] %vm1061, %v1058
    // Predicated region
    $region38: #{tpu_custom_call.1} parent=1 // pred_check
      _
    $region39: #{tpu_custom_call.1} parent=1 // pred_check_branch
      %1065 = sbr.rel (0) target = $region41
    $region40: #{tpu_custom_call.1} parent=1 // pred_region
      _
    $region41: #{tpu_custom_call.1} parent=1 // pred_fallthru
      _
    // Predicated region
    $region42: #{tpu_custom_call.1} parent=1 // pred_check
      _
    $region43: #{tpu_custom_call.1} parent=1 // pred_check_branch
      %1067 = sbr.rel (0) target = $region45
    $region44: #{tpu_custom_call.1} parent=1 // pred_region
      _
    $region45: #{tpu_custom_call.1} parent=1 // pred_fallthru
      _
    %1068 = vsyncpa [#allocation3], 1

</llo_original>
